<compile_context>
chip_gen: v7x
topology: tpu7x:2x2x1
jax: 0.10.0
libtpu: 0.0.40
codegen_flags: <defaults>
</compile_context>

<pallas_src>
import functools

import jax
import jax.numpy as jnp
import numpy as np
from jax import lax
from jax.experimental import pallas as pl
from jax.experimental.pallas import tpu as pltpu


def _round_up(x, m):
    return (x + m - 1) // m * m


def _conv3x3_relu_kernel(dec_ref, enc_ref, mask_ref, wd_ref, we_ref, b_ref,
                         o_ref, *, W, hw_pad, tco):
    """One (cout-block, batch-element) grid step.

    dec_ref : (1, Cd, HWp)      decoder activations (f32), NCHW row-major flattened
    enc_ref : (1, Ce, HWp)      encoder activations (f32)
    mask_ref: (9, 1, HWp)       per-tap 0/1 border masks (the conv's 'same' padding)
    wd_ref  : (1, 9*tco, Cd)    bf16 tap-major weights, dec half of K
    we_ref  : (1, 9*tco, Ce)    bf16 tap-major weights, enc half of K
    b_ref   : (1, tco, 1)       bias (f32, zero-padded rows)
    o_ref   : (1, tco, HWp)     lane-dense, NCHW-ordered output block
    """
    # bf16 operands for the MXU; accumulate in f32.
    dec = dec_ref[0].astype(jnp.bfloat16)
    enc = enc_ref[0].astype(jnp.bfloat16)

    # K split over dec/enc => no channel-concat staging pass.
    # M = 9*tco keeps MXU rows filled even when the Cout block is small.
    # (If Cin < ~256 on v6e, a single K=9*Cin im2col matmul fills K better; the
    #  post-matmul-roll form below is the VMEM/store-friendly choice overall.)
    z = jnp.dot(wd_ref[0], dec, preferred_element_type=jnp.float32)
    z = z + jnp.dot(we_ref[0], enc, preferred_element_type=jnp.float32)
    # z: (9*tco, HWp) f32 — rows [t*tco:(t+1)*tco] are tap t's unshifted response.

    # Roll + mask commute with the matmul: realize the 3x3 'same' zero padding on
    # the (tco, HWp) output slices (mask multiply kept in f32 for v5e's VPU).
    acc = b_ref[0]                                   # (tco, 1) broadcasts over lanes
    for kh in range(3):
        for kw in range(3):
            t = kh * 3 + kw
            s = (kh - 1) * W + (kw - 1)              # flattened spatial offset
            zt = z[t * tco:(t + 1) * tco, :]         # tco % 8 == 0 -> aligned slice
            if s != 0:
                zt = pltpu.roll(zt, (-s) % hw_pad, axis=1)
            acc = acc + mask_ref[t] * zt
    o_ref[0] = jnp.maximum(acc, 0.0).astype(o_ref.dtype)


def pack_params(weight, bias, dec_channels, *, cout_block=64):
    """One-time repack, hoisted out of the per-call path.

    weight: OIHW (Cout, Cin, 3, 3), Cin = Cd + Ce (dec channels first, matching
            torch.cat([dec, enc], dim=1));  bias: (Cout,).
    Returns (wd, we, b_blk, tco):
      wd (G, 9*tco, Cd) bf16, we (G, 9*tco, Ce) bf16, b_blk (G, tco, 1) f32.
      Row (t*tco + co) of block g holds weight[g*tco + co, :, kh, kw], t = 3*kh+kw.
    """
    cout, cin, kh, kw = weight.shape
    cd = dec_channels
    tco = min(_round_up(cout, 8), _round_up(cout_block, 8))
    coutp = _round_up(cout, tco)
    g = coutp // tco

    w = jnp.transpose(weight, (2, 3, 0, 1))                     # (3,3,Cout,Cin)
    w = jnp.pad(w, ((0, 0), (0, 0), (0, coutp - cout), (0, 0)))  # pad Cout
    w = w.reshape(9, g, tco, cin)                                # (t, blk, co, ci)
    w = jnp.transpose(w, (1, 0, 2, 3)).reshape(g, 9 * tco, cin)  # (blk, t*tco+co, ci)
    wd = w[..., :cd].astype(jnp.bfloat16)
    we = w[..., cd:].astype(jnp.bfloat16)

    b = jnp.pad(bias, (0, coutp - cout)).reshape(g, tco, 1).astype(jnp.float32)
    return wd, we, b, tco


def make_tap_masks(H, W, hw_pad, dtype=jnp.float32):
    """(9, 1, HWp) 0/1 masks implementing the 3x3 'same' zero padding (zero in the
    lane-padding columns)."""
    hw = H * W
    r, c = np.divmod(np.arange(hw), W)
    masks = np.zeros((9, 1, hw_pad), np.float32)
    for kh in range(3):
        for kw in range(3):
            dh, dw = kh - 1, kw - 1
            valid = ((r + dh >= 0) & (r + dh < H) &
                     (c + dw >= 0) & (c + dw < W))
            masks[kh * 3 + kw, 0, :hw] = valid
    return jnp.asarray(masks, dtype)


def conv_bottleneck(dec, enc, wd, we, b_blk, tap_masks, *, out_channels):
    """dec, enc: NCHW f32; wd/we/b_blk from pack_params; tap_masks from make_tap_masks."""
    n, cd, h, w = dec.shape
    ce = enc.shape[1]
    g, nine_tco, _ = wd.shape
    tco = nine_tco // 9
    coutp = g * tco
    hw = h * w
    hw_pad = tap_masks.shape[-1]

    # Row-major (H, W) -> H*W keeps NCHW ordering; lane-pad to a multiple of 128
    # so every output store is an unmasked full-lane vst.
    dec_f = dec.reshape(n, cd, hw)
    enc_f = enc.reshape(n, ce, hw)
    if hw_pad != hw:
        dec_f = jnp.pad(dec_f, ((0, 0), (0, 0), (0, hw_pad - hw)))
        enc_f = jnp.pad(enc_f, ((0, 0), (0, 0), (0, hw_pad - hw)))

    kernel = functools.partial(_conv3x3_relu_kernel, W=w, hw_pad=hw_pad, tco=tco)
    single = pl.Buffered(1)   # weights/bias/masks: invariant along the inner axis

    out = pl.pallas_call(
        kernel,
        out_shape=jax.ShapeDtypeStruct((n, coutp, hw_pad), dec.dtype),
        grid_spec=pltpu.PrefetchScalarGridSpec(
            num_scalar_prefetch=0,
            # Cout blocks outer (weights held across the inner batch sweep),
            # batch inner.  Both axes parallel -> megacore/v7x 2-TC sharding.
            grid=(g, n),
            in_specs=[
                pl.BlockSpec((1, cd, hw_pad), lambda j, i: (i, 0, 0)),
                pl.BlockSpec((1, ce, hw_pad), lambda j, i: (i, 0, 0)),
                pl.BlockSpec((9, 1, hw_pad), lambda j, i: (0, 0, 0),
                             pipeline_mode=single),
                pl.BlockSpec((1, nine_tco, cd), lambda j, i: (j, 0, 0),
                             pipeline_mode=single),
                pl.BlockSpec((1, nine_tco, ce), lambda j, i: (j, 0, 0),
                             pipeline_mode=single),
                pl.BlockSpec((1, tco, 1), lambda j, i: (j, 0, 0),
                             pipeline_mode=single),
            ],
            out_specs=pl.BlockSpec((1, tco, hw_pad), lambda j, i: (i, j, 0)),
        ),
        compiler_params=pltpu.CompilerParams(
            dimension_semantics=("parallel", "parallel"),
            vmem_limit_bytes=48 * 1024 * 1024),   # > 16/32 MiB defaults, < v7x 64 MiB
    )(dec_f, enc_f, tap_masks, wd, we, b_blk)

    # (N, Coutp, HWp) is NCHW-ordered; drop channel/lane padding and reshape.
    return out[:, :out_channels, :hw].reshape(n, out_channels, h, w)


def reference(dec, enc, weight, bias):
    x = jnp.concatenate([dec, enc], axis=1)
    y = lax.conv_general_dilated(
        x, weight, window_strides=(1, 1), padding=((1, 1), (1, 1)),
        dimension_numbers=("NCHW", "OIHW", "NCHW"))
    y = y + bias[None, :, None, None]
    return jnp.maximum(y, 0.0)


def _run_case(key, *, N, Cd, Ce, H, W, Cout, cout_block):
    k_dec, k_enc, k_w, k_b = jax.random.split(key, 4)
    Cin = Cd + Ce
    dec = jax.random.normal(k_dec, (N, Cd, H, W), jnp.float32)
    enc = jax.random.normal(k_enc, (N, Ce, H, W), jnp.float32)
    weight = 0.1 * jax.random.normal(k_w, (Cout, Cin, 3, 3), jnp.float32)
    bias = 0.1 * jax.random.normal(k_b, (Cout,), jnp.float32)

    # One-time parameter / constant packing (hoisted out of the forward pass).
    wd, we, b_blk, _ = pack_params(weight, bias, Cd, cout_block=cout_block)
    hw_pad = _round_up(H * W, 128)
    tap_masks = make_tap_masks(H, W, hw_pad)

    out = jax.block_until_ready(
        conv_bottleneck(dec, enc, wd, we, b_blk, tap_masks, out_channels=Cout))
    ref = jax.block_until_ready(reference(dec, enc, weight, bias))
    # bf16 matmul operands (f32 accumulation) -> tolerance loosened vs f32 ref.
    np.testing.assert_allclose(np.asarray(out), np.asarray(ref),
                               rtol=2e-2, atol=2e-2)


if __name__ == "__main__":
    key = jax.random.PRNGKey(0)
    k1, k2 = jax.random.split(key)
    # Toy ConvBottleneck: dec/enc (2,4,16,16) -> in_channels=8, out_channels=4,
    # H*W=256 already lane dense, single Cout block.
    _run_case(k1, N=2, Cd=4, Ce=4, H=16, W=16, Cout=4, cout_block=64)
    # Exercise lane padding (12*16=192 -> 256), Cout padding (12 -> 16) and the
    # Cout-block grid axis (2 blocks of 8) with N=1.
    _run_case(k2, N=1, Cd=8, Ce=8, H=12, W=16, Cout=12, cout_block=8)
    print("KERNEL_OK")
</pallas_src>

<mosaic_0001>
module attributes {stable_mosaic.version = 11 : i64} {
  func.func @_conv3x3_relu_kernel(%arg0: i32, %arg1: i32, %arg2: memref<1x4x256xf32, #tpu.memory_space<vmem>>, %arg3: memref<1x4x256xf32, #tpu.memory_space<vmem>>, %arg4: memref<9x1x256xf32, #tpu.memory_space<vmem>>, %arg5: memref<1x72x4xbf16, #tpu.memory_space<vmem>>, %arg6: memref<1x72x4xbf16, #tpu.memory_space<vmem>>, %arg7: memref<1x8x1xf32, #tpu.memory_space<vmem>>, %arg8: memref<1x8x256xf32, #tpu.memory_space<vmem>>) attributes {dimension_semantics = [#tpu.dimension_semantics<parallel>, #tpu.dimension_semantics<parallel>], iteration_bounds = array<i64: 1, 2>, scalar_prefetch = 0 : i64, scratch_operands = 0 : i64, tpu.core_type = #tpu.core_type<tc>, window_params = [{transform_indices = @transform_0, window_bounds = array<i64: 1, 4, 256>}, {transform_indices = @transform_1, window_bounds = array<i64: 1, 4, 256>}, {pipeline_mode = #tpu.pipeline_mode<synchronous>, transform_indices = @transform_2, window_bounds = array<i64: 9, 1, 256>}, {pipeline_mode = #tpu.pipeline_mode<synchronous>, transform_indices = @transform_3, window_bounds = array<i64: 1, 72, 4>}, {pipeline_mode = #tpu.pipeline_mode<synchronous>, transform_indices = @transform_4, window_bounds = array<i64: 1, 72, 4>}, {pipeline_mode = #tpu.pipeline_mode<synchronous>, transform_indices = @transform_5, window_bounds = array<i64: 1, 8, 1>}, {transform_indices = @transform_6, window_bounds = array<i64: 1, 8, 256>}]} {
    %c0 = arith.constant 0 : index
    %c0_0 = arith.constant 0 : index
    %c0_1 = arith.constant 0 : index
    %0 = vector.load %arg2[%c0, %c0_0, %c0_1] : memref<1x4x256xf32, #tpu.memory_space<vmem>>, vector<1x4x256xf32>
    %1 = vector.shape_cast %0 : vector<1x4x256xf32> to vector<4x256xf32>
    %2 = arith.truncf %1 : vector<4x256xf32> to vector<4x256xbf16>
    %c0_2 = arith.constant 0 : index
    %c0_3 = arith.constant 0 : index
    %c0_4 = arith.constant 0 : index
    %3 = vector.load %arg3[%c0_2, %c0_3, %c0_4] : memref<1x4x256xf32, #tpu.memory_space<vmem>>, vector<1x4x256xf32>
    %4 = vector.shape_cast %3 : vector<1x4x256xf32> to vector<4x256xf32>
    %5 = arith.truncf %4 : vector<4x256xf32> to vector<4x256xbf16>
    %c0_5 = arith.constant 0 : index
    %c0_6 = arith.constant 0 : index
    %c0_7 = arith.constant 0 : index
    %6 = vector.load %arg5[%c0_5, %c0_6, %c0_7] : memref<1x72x4xbf16, #tpu.memory_space<vmem>>, vector<1x72x4xbf16>
    %7 = vector.shape_cast %6 : vector<1x72x4xbf16> to vector<72x4xbf16>
    %cst = arith.constant dense<0.000000e+00> : vector<72x256xf32>
    %8 = tpu.matmul %7, %2, %cst {dimension_numbers = #tpu.dot_dimension_numbers<[1], [0], [0], [1], [0, 0, 1, 1], [], []>} : vector<72x4xbf16>, vector<4x256xbf16>, vector<72x256xf32> -> vector<72x256xf32>
    %c0_8 = arith.constant 0 : index
    %c0_9 = arith.constant 0 : index
    %c0_10 = arith.constant 0 : index
    %9 = vector.load %arg6[%c0_8, %c0_9, %c0_10] : memref<1x72x4xbf16, #tpu.memory_space<vmem>>, vector<1x72x4xbf16>
    %10 = vector.shape_cast %9 : vector<1x72x4xbf16> to vector<72x4xbf16>
    %cst_11 = arith.constant dense<0.000000e+00> : vector<72x256xf32>
    %11 = tpu.matmul %10, %5, %cst_11 {dimension_numbers = #tpu.dot_dimension_numbers<[1], [0], [0], [1], [0, 0, 1, 1], [], []>} : vector<72x4xbf16>, vector<4x256xbf16>, vector<72x256xf32> -> vector<72x256xf32>
    %12 = arith.addf %8, %11 : vector<72x256xf32>
    %c0_12 = arith.constant 0 : index
    %c0_13 = arith.constant 0 : index
    %c0_14 = arith.constant 0 : index
    %13 = vector.load %arg7[%c0_12, %c0_13, %c0_14] : memref<1x8x1xf32, #tpu.memory_space<vmem>>, vector<1x8x1xf32>
    %14 = vector.shape_cast %13 : vector<1x8x1xf32> to vector<8x1xf32>
    %15 = vector.extract_strided_slice %12 {offsets = [0, 0], sizes = [8, 256], strides = [1, 1]} : vector<72x256xf32> to vector<8x256xf32>
    %c17_i32 = arith.constant 17 : i32
    %16 = tpu.dynamic_rotate %15 by %c17_i32 dim 1 : vector<8x256xf32>, i32 -> vector<8x256xf32>
    %c0_15 = arith.constant 0 : index
    %c0_16 = arith.constant 0 : index
    %c0_17 = arith.constant 0 : index
    %17 = vector.load %arg4[%c0_15, %c0_16, %c0_17] : memref<9x1x256xf32, #tpu.memory_space<vmem>>, vector<1x1x256xf32>
    %18 = vector.shape_cast %17 : vector<1x1x256xf32> to vector<1x256xf32>
    %19 = vector.broadcast %18 : vector<1x256xf32> to vector<8x256xf32>
    %20 = arith.mulf %19, %16 : vector<8x256xf32>
    %21 = vector.broadcast %14 : vector<8x1xf32> to vector<8x256xf32>
    %22 = arith.addf %21, %20 : vector<8x256xf32>
    %23 = vector.extract_strided_slice %12 {offsets = [8, 0], sizes = [8, 256], strides = [1, 1]} : vector<72x256xf32> to vector<8x256xf32>
    %c16_i32 = arith.constant 16 : i32
    %24 = tpu.dynamic_rotate %23 by %c16_i32 dim 1 : vector<8x256xf32>, i32 -> vector<8x256xf32>
    %c1 = arith.constant 1 : index
    %c0_18 = arith.constant 0 : index
    %c0_19 = arith.constant 0 : index
    %25 = vector.load %arg4[%c1, %c0_18, %c0_19] : memref<9x1x256xf32, #tpu.memory_space<vmem>>, vector<1x1x256xf32>
    %26 = vector.shape_cast %25 : vector<1x1x256xf32> to vector<1x256xf32>
    %27 = vector.broadcast %26 : vector<1x256xf32> to vector<8x256xf32>
    %28 = arith.mulf %27, %24 : vector<8x256xf32>
    %29 = arith.addf %22, %28 : vector<8x256xf32>
    %30 = vector.extract_strided_slice %12 {offsets = [16, 0], sizes = [8, 256], strides = [1, 1]} : vector<72x256xf32> to vector<8x256xf32>
    %c15_i32 = arith.constant 15 : i32
    %31 = tpu.dynamic_rotate %30 by %c15_i32 dim 1 : vector<8x256xf32>, i32 -> vector<8x256xf32>
    %c2 = arith.constant 2 : index
    %c0_20 = arith.constant 0 : index
    %c0_21 = arith.constant 0 : index
    %32 = vector.load %arg4[%c2, %c0_20, %c0_21] : memref<9x1x256xf32, #tpu.memory_space<vmem>>, vector<1x1x256xf32>
    %33 = vector.shape_cast %32 : vector<1x1x256xf32> to vector<1x256xf32>
    %34 = vector.broadcast %33 : vector<1x256xf32> to vector<8x256xf32>
    %35 = arith.mulf %34, %31 : vector<8x256xf32>
    %36 = arith.addf %29, %35 : vector<8x256xf32>
    %37 = vector.extract_strided_slice %12 {offsets = [24, 0], sizes = [8, 256], strides = [1, 1]} : vector<72x256xf32> to vector<8x256xf32>
    %c1_i32 = arith.constant 1 : i32
    %38 = tpu.dynamic_rotate %37 by %c1_i32 dim 1 : vector<8x256xf32>, i32 -> vector<8x256xf32>
    %c3 = arith.constant 3 : index
    %c0_22 = arith.constant 0 : index
    %c0_23 = arith.constant 0 : index
    %39 = vector.load %arg4[%c3, %c0_22, %c0_23] : memref<9x1x256xf32, #tpu.memory_space<vmem>>, vector<1x1x256xf32>
    %40 = vector.shape_cast %39 : vector<1x1x256xf32> to vector<1x256xf32>
    %41 = vector.broadcast %40 : vector<1x256xf32> to vector<8x256xf32>
    %42 = arith.mulf %41, %38 : vector<8x256xf32>
    %43 = arith.addf %36, %42 : vector<8x256xf32>
    %44 = vector.extract_strided_slice %12 {offsets = [32, 0], sizes = [8, 256], strides = [1, 1]} : vector<72x256xf32> to vector<8x256xf32>
    %c4 = arith.constant 4 : index
    %c0_24 = arith.constant 0 : index
    %c0_25 = arith.constant 0 : index
    %45 = vector.load %arg4[%c4, %c0_24, %c0_25] : memref<9x1x256xf32, #tpu.memory_space<vmem>>, vector<1x1x256xf32>
    %46 = vector.shape_cast %45 : vector<1x1x256xf32> to vector<1x256xf32>
    %47 = vector.broadcast %46 : vector<1x256xf32> to vector<8x256xf32>
    %48 = arith.mulf %47, %44 : vector<8x256xf32>
    %49 = arith.addf %43, %48 : vector<8x256xf32>
    %50 = vector.extract_strided_slice %12 {offsets = [40, 0], sizes = [8, 256], strides = [1, 1]} : vector<72x256xf32> to vector<8x256xf32>
    %c255_i32 = arith.constant 255 : i32
    %51 = tpu.dynamic_rotate %50 by %c255_i32 dim 1 : vector<8x256xf32>, i32 -> vector<8x256xf32>
    %c5 = arith.constant 5 : index
    %c0_26 = arith.constant 0 : index
    %c0_27 = arith.constant 0 : index
    %52 = vector.load %arg4[%c5, %c0_26, %c0_27] : memref<9x1x256xf32, #tpu.memory_space<vmem>>, vector<1x1x256xf32>
    %53 = vector.shape_cast %52 : vector<1x1x256xf32> to vector<1x256xf32>
    %54 = vector.broadcast %53 : vector<1x256xf32> to vector<8x256xf32>
    %55 = arith.mulf %54, %51 : vector<8x256xf32>
    %56 = arith.addf %49, %55 : vector<8x256xf32>
    %57 = vector.extract_strided_slice %12 {offsets = [48, 0], sizes = [8, 256], strides = [1, 1]} : vector<72x256xf32> to vector<8x256xf32>
    %c241_i32 = arith.constant 241 : i32
    %58 = tpu.dynamic_rotate %57 by %c241_i32 dim 1 : vector<8x256xf32>, i32 -> vector<8x256xf32>
    %c6 = arith.constant 6 : index
    %c0_28 = arith.constant 0 : index
    %c0_29 = arith.constant 0 : index
    %59 = vector.load %arg4[%c6, %c0_28, %c0_29] : memref<9x1x256xf32, #tpu.memory_space<vmem>>, vector<1x1x256xf32>
    %60 = vector.shape_cast %59 : vector<1x1x256xf32> to vector<1x256xf32>
    %61 = vector.broadcast %60 : vector<1x256xf32> to vector<8x256xf32>
    %62 = arith.mulf %61, %58 : vector<8x256xf32>
    %63 = arith.addf %56, %62 : vector<8x256xf32>
    %64 = vector.extract_strided_slice %12 {offsets = [56, 0], sizes = [8, 256], strides = [1, 1]} : vector<72x256xf32> to vector<8x256xf32>
    %c240_i32 = arith.constant 240 : i32
    %65 = tpu.dynamic_rotate %64 by %c240_i32 dim 1 : vector<8x256xf32>, i32 -> vector<8x256xf32>
    %c7 = arith.constant 7 : index
    %c0_30 = arith.constant 0 : index
    %c0_31 = arith.constant 0 : index
    %66 = vector.load %arg4[%c7, %c0_30, %c0_31] : memref<9x1x256xf32, #tpu.memory_space<vmem>>, vector<1x1x256xf32>
    %67 = vector.shape_cast %66 : vector<1x1x256xf32> to vector<1x256xf32>
    %68 = vector.broadcast %67 : vector<1x256xf32> to vector<8x256xf32>
    %69 = arith.mulf %68, %65 : vector<8x256xf32>
    %70 = arith.addf %63, %69 : vector<8x256xf32>
    %71 = vector.extract_strided_slice %12 {offsets = [64, 0], sizes = [8, 256], strides = [1, 1]} : vector<72x256xf32> to vector<8x256xf32>
    %c239_i32 = arith.constant 239 : i32
    %72 = tpu.dynamic_rotate %71 by %c239_i32 dim 1 : vector<8x256xf32>, i32 -> vector<8x256xf32>
    %c8 = arith.constant 8 : index
    %c0_32 = arith.constant 0 : index
    %c0_33 = arith.constant 0 : index
    %73 = vector.load %arg4[%c8, %c0_32, %c0_33] : memref<9x1x256xf32, #tpu.memory_space<vmem>>, vector<1x1x256xf32>
    %74 = vector.shape_cast %73 : vector<1x1x256xf32> to vector<1x256xf32>
    %75 = vector.broadcast %74 : vector<1x256xf32> to vector<8x256xf32>
    %76 = arith.mulf %75, %72 : vector<8x256xf32>
    %77 = arith.addf %70, %76 : vector<8x256xf32>
    %cst_34 = arith.constant 0.000000e+00 : f32
    %78 = vector.broadcast %cst_34 : f32 to vector<8x256xf32>
    %79 = arith.maximumf %77, %78 : vector<8x256xf32>
    %c0_35 = arith.constant 0 : index
    %c0_36 = arith.constant 0 : index
    %c0_37 = arith.constant 0 : index
    %80 = vector.load %arg8[%c0_35, %c0_36, %c0_37] : memref<1x8x256xf32, #tpu.memory_space<vmem>>, vector<1x8x256xf32>
    %81 = vector.shape_cast %80 : vector<1x8x256xf32> to vector<8x256xf32>
    %82 = vector.shape_cast %79 : vector<8x256xf32> to vector<1x8x256xf32>
    tpu.vector_store %arg8[%c0_35, %c0_36, %c0_37], %82 {strides = array<i32>} : memref<1x8x256xf32, #tpu.memory_space<vmem>>, vector<1x8x256xf32>,
    return
  }
  func.func @transform_0(%arg0: i32, %arg1: i32) -> (i32, i32, i32) {
    %c0_i32 = arith.constant 0 : i32
    %c0_i32_0 = arith.constant 0 : i32
    %c0_i32_1 = arith.constant 0 : i32
    return %arg1, %c0_i32, %c0_i32_0 : i32, i32, i32
  }
  func.func @transform_1(%arg0: i32, %arg1: i32) -> (i32, i32, i32) {
    %c0_i32 = arith.constant 0 : i32
    %c0_i32_0 = arith.constant 0 : i32
    %c0_i32_1 = arith.constant 0 : i32
    return %arg1, %c0_i32, %c0_i32_0 : i32, i32, i32
  }
  func.func @transform_2(%arg0: i32, %arg1: i32) -> (i32, i32, i32) {
    %c0_i32 = arith.constant 0 : i32
    %c0_i32_0 = arith.constant 0 : i32
    %c0_i32_1 = arith.constant 0 : i32
    %c0_i32_2 = arith.constant 0 : i32
    return %c0_i32, %c0_i32_0, %c0_i32_1 : i32, i32, i32
  }
  func.func @transform_3(%arg0: i32, %arg1: i32) -> (i32, i32, i32) {
    %c0_i32 = arith.constant 0 : i32
    %c0_i32_0 = arith.constant 0 : i32
    %c0_i32_1 = arith.constant 0 : i32
    return %arg0, %c0_i32, %c0_i32_0 : i32, i32, i32
  }
  func.func @transform_4(%arg0: i32, %arg1: i32) -> (i32, i32, i32) {
    %c0_i32 = arith.constant 0 : i32
    %c0_i32_0 = arith.constant 0 : i32
    %c0_i32_1 = arith.constant 0 : i32
    return %arg0, %c0_i32, %c0_i32_0 : i32, i32, i32
  }
  func.func @transform_5(%arg0: i32, %arg1: i32) -> (i32, i32, i32) {
    %c0_i32 = arith.constant 0 : i32
    %c0_i32_0 = arith.constant 0 : i32
    %c0_i32_1 = arith.constant 0 : i32
    return %arg0, %c0_i32, %c0_i32_0 : i32, i32, i32
  }
  func.func @transform_6(%arg0: i32, %arg1: i32) -> (i32, i32, i32) {
    %c0_i32 = arith.constant 0 : i32
    %c0_i32_0 = arith.constant 0 : i32
    return %arg1, %arg0, %c0_i32 : i32, i32, i32
  }
}

</mosaic_0001>

<llo_original>
// kernel: tpu_custom_call.1
$region0: #{tpu_custom_call.1}
  #allocation0 [shape = 'u32[]', space=smem, size = 0x4, offset = 0x4, fixed_abs, tag = 'smem constant byte address 0x4 - core index']
  #allocation1 [shape = 'u32[144,128]{1,0:T(1,128)}', space=vmem, size = 0x12000, scoped, tag = 'internal scratch']
  %s0 = inlined_call_operand.vmem [shape: f32[2,4,256], index: 0, kind: input, shape index: {}]
  %s1 = inlined_call_operand.vmem [shape: f32[2,4,256], index: 1, kind: input, shape index: {}]
  %s2 = inlined_call_operand.vmem [shape: f32[9,1,256], index: 2, kind: input, shape index: {}]
  %s3 = inlined_call_operand.vmem [shape: bf16[1,72,4], index: 3, kind: input, shape index: {}]
  %s4 = inlined_call_operand.vmem [shape: bf16[1,72,4], index: 4, kind: input, shape index: {}]
  %s5 = inlined_call_operand.vmem [shape: f32[1,8,1], index: 5, kind: input, shape index: {}]
  %s6 = inlined_call_operand.hbm [shape: f32[2,8,256], index: 6, kind: output, shape index: {}]
  %s7 = sld [smem:[#allocation0]]
  $region57: #{tpu_custom_call.1} parent=0
    _
  %s9 = ssub.s32 1, %s7
  %s10 = scalar_select 0, %s9, %s7
  $region1: #{tpu_custom_call.1} parent=0
    #allocation2 [shape = 'u8[16384]{0}', space=vmem, size = 0x4000, scoped, tag = 'output window, operand 0']
    #allocation3 [shape = 's32[2]{0}', space=sflag, size = 0x8, scoped, tag = 'scoped memory for tpu_custom_call.1']
    %11 = vsyncpa [#allocation3], 0
    %s12 = scalar_lea.sflag [#allocation3], 1
    %13 = vsyncpa %s12, 0
    loop: start=0, step=1, limit=4
    $region2: #{tpu_custom_call.1} parent=1 // loop_pre_header
      _
    $region3: #{tpu_custom_call.1} parent=1 // loop_header
      %s15 = sphi 0, %s19
      %p16 = scmp.ge.s32.totalorder %s15, 4
      %s22 = sphi 0, %s34
      %s23 = sphi 0, %s30
      %s24 = sphi 0, %s22
      %s25 = sphi 0, %s23
      %s26 = sphi 0, %s24
      %s27 = sphi 0, %s25
      %s37 = sphi 0, %s39
      %s40 = sphi 0, %s37
      %s41 = sphi 0, %s40
      %s57 = sphi 0, %s41
      %s63 = sphi 0, %s65
      %s66 = sphi 0, %s63
      %s67 = sphi 0, %s66
      %s83 = sphi 0, %s67
      %s87 = sphi 0, %s87
      %s89 = sphi 0, %s87
      %s90 = sphi 0, %s89
      %s104 = sphi 0, %s90
      %s110 = sphi 0, %s112
      %s113 = sphi 0, %s110
      %s114 = sphi 0, %s113
      %s130 = sphi 0, %s114
      %s136 = sphi 0, %s138
      %s139 = sphi 0, %s136
      %s140 = sphi 0, %s139
      %s156 = sphi 0, %s140
      %s162 = sphi 0, %s164
      %s165 = sphi 0, %s162
      %s166 = sphi 0, %s165
      %s182 = sphi 0, %s166
      %s190 = sphi 0, %s192
      %s193 = sphi 0, %s190
      %s194 = sphi 0, %s193
      %s210 = sphi 0, %s194
    $region4: #{tpu_custom_call.1} parent=1 // loop_header_branch
      %18 = sbr.rel (%p16) target = $region8
    $region5: #{tpu_custom_call.1} parent=1 // loop_body
      %s20 = ssub.s32 %s15, 1
      %s21 = ssub.s32 %s15, 2
      %s28 = sadd.s32 1, %s23
      %p29 = scmp.ge.s32.totalorder %s28, 2
      %s30 = scalar_select %p29, 0, %s28
      %s31 = sadd.s32 1, %s22
      %s32 = scalar_select %p29, %s31, %s22
      %p33 = scmp.ge.s32.totalorder %s32, 1
      %s34 = scalar_select %p33, 0, %s32
      %s35 = ssub.s32 %s23, %s30
      %p36 = scmp.eq.s32.totalorder %s35, 0
      %s38 = sadd.s32 %s37, 1
      %s39 = scalar_select %p36, %s37, %s38
      %p42 = pneg %p36
      %p43 = scmp.eq.s32.totalorder %s15, 1
      %p44 = por %p42, %p43
      %p45 = scmp.ne.s32.totalorder %s37, %s40
      %p46 = scmp.eq.s32.totalorder %s15, 0
      %p47 = por %p45, %p46
      %p48 = scmp.ne.s32.totalorder %s37, %s40
      %p49 = scmp.eq.s32.totalorder %s20, 1
      %p50 = por %p48, %p49
      %p51 = scmp.ne.s32.totalorder %s40, %s41
      %p52 = scmp.eq.s32.totalorder %s20, 0
      %p53 = por %p51, %p52
      %p54 = scmp.ne.s32.totalorder %s40, %s41
      %p55 = scmp.eq.s32.totalorder %s21, 1
      %p56 = por %p54, %p55
      %p58 = scmp.ne.s32.totalorder %s41, %s57
      %p59 = scmp.eq.s32.totalorder %s21, 0
      %p60 = por %p58, %p59
      %s61 = ssub.s32 %s23, %s30
      %p62 = scmp.eq.s32.totalorder %s61, 0
      %s64 = sadd.s32 %s63, 1
      %s65 = scalar_select %p62, %s63, %s64
      %p68 = pneg %p62
      %p69 = scmp.eq.s32.totalorder %s15, 1
      %p70 = por %p68, %p69
      %p71 = scmp.ne.s32.totalorder %s63, %s66
      %p72 = scmp.eq.s32.totalorder %s15, 0
      %p73 = por %p71, %p72
      %p74 = scmp.ne.s32.totalorder %s63, %s66
      %p75 = scmp.eq.s32.totalorder %s20, 1
      %p76 = por %p74, %p75
      %p77 = scmp.ne.s32.totalorder %s66, %s67
      %p78 = scmp.eq.s32.totalorder %s20, 0
      %p79 = por %p77, %p78
      %p80 = scmp.ne.s32.totalorder %s66, %s67
      %p81 = scmp.eq.s32.totalorder %s21, 1
      %p82 = por %p80, %p81
      %p84 = scmp.ne.s32.totalorder %s67, %s83
      %p85 = scmp.eq.s32.totalorder %s21, 0
      %p86 = por %p84, %p85
      %s88 = sadd.s32 %s87, 1
      %p91 = scmp.eq.s32.totalorder %s15, 1
      %p92 = scmp.ne.s32.totalorder %s87, %s89
      %p93 = scmp.eq.s32.totalorder %s15, 0
      %p94 = por %p92, %p93
      %p95 = scmp.ne.s32.totalorder %s87, %s89
      %p96 = scmp.eq.s32.totalorder %s20, 1
      %p97 = por %p95, %p96
      %p98 = scmp.ne.s32.totalorder %s89, %s90
      %p99 = scmp.eq.s32.totalorder %s20, 0
      %p100 = por %p98, %p99
      %p101 = scmp.ne.s32.totalorder %s89, %s90
      %p102 = scmp.eq.s32.totalorder %s21, 1
      %p103 = por %p101, %p102
      %p105 = scmp.ne.s32.totalorder %s90, %s104
      %p106 = scmp.eq.s32.totalorder %s21, 0
      %p107 = por %p105, %p106
      %s108 = ssub.s32 %s22, %s34
      %p109 = scmp.eq.s32.totalorder %s108, 0
      %s111 = sadd.s32 %s110, 1
      %s112 = scalar_select %p109, %s110, %s111
      %p115 = pneg %p109
      %p116 = scmp.eq.s32.totalorder %s15, 1
      %p117 = por %p115, %p116
      %p118 = scmp.ne.s32.totalorder %s110, %s113
      %p119 = scmp.eq.s32.totalorder %s15, 0
      %p120 = por %p118, %p119
      %p121 = scmp.ne.s32.totalorder %s110, %s113
      %p122 = scmp.eq.s32.totalorder %s20, 1
      %p123 = por %p121, %p122
      %p124 = scmp.ne.s32.totalorder %s113, %s114
      %p125 = scmp.eq.s32.totalorder %s20, 0
      %p126 = por %p124, %p125
      %p127 = scmp.ne.s32.totalorder %s113, %s114
      %p128 = scmp.eq.s32.totalorder %s21, 1
      %p129 = por %p127, %p128
      %p131 = scmp.ne.s32.totalorder %s114, %s130
      %p132 = scmp.eq.s32.totalorder %s21, 0
      %p133 = por %p131, %p132
      %s134 = ssub.s32 %s22, %s34
      %p135 = scmp.eq.s32.totalorder %s134, 0
      %s137 = sadd.s32 %s136, 1
      %s138 = scalar_select %p135, %s136, %s137
      %p141 = pneg %p135
      %p142 = scmp.eq.s32.totalorder %s15, 1
      %p143 = por %p141, %p142
      %p144 = scmp.ne.s32.totalorder %s136, %s139
      %p145 = scmp.eq.s32.totalorder %s15, 0
      %p146 = por %p144, %p145
      %p147 = scmp.ne.s32.totalorder %s136, %s139
      %p148 = scmp.eq.s32.totalorder %s20, 1
      %p149 = por %p147, %p148
      %p150 = scmp.ne.s32.totalorder %s139, %s140
      %p151 = scmp.eq.s32.totalorder %s20, 0
      %p152 = por %p150, %p151
      %p153 = scmp.ne.s32.totalorder %s139, %s140
      %p154 = scmp.eq.s32.totalorder %s21, 1
      %p155 = por %p153, %p154
      %p157 = scmp.ne.s32.totalorder %s140, %s156
      %p158 = scmp.eq.s32.totalorder %s21, 0
      %p159 = por %p157, %p158
      %s160 = ssub.s32 %s22, %s34
      %p161 = scmp.eq.s32.totalorder %s160, 0
      %s163 = sadd.s32 %s162, 1
      %s164 = scalar_select %p161, %s162, %s163
      %p167 = pneg %p161
      %p168 = scmp.eq.s32.totalorder %s15, 1
      %p169 = por %p167, %p168
      %p170 = scmp.ne.s32.totalorder %s162, %s165
      %p171 = scmp.eq.s32.totalorder %s15, 0
      %p172 = por %p170, %p171
      %p173 = scmp.ne.s32.totalorder %s162, %s165
      %p174 = scmp.eq.s32.totalorder %s20, 1
      %p175 = por %p173, %p174
      %p176 = scmp.ne.s32.totalorder %s165, %s166
      %p177 = scmp.eq.s32.totalorder %s20, 0
      %p178 = por %p176, %p177
      %p179 = scmp.ne.s32.totalorder %s165, %s166
      %p180 = scmp.eq.s32.totalorder %s21, 1
      %p181 = por %p179, %p180
      %p183 = scmp.ne.s32.totalorder %s166, %s182
      %p184 = scmp.eq.s32.totalorder %s21, 0
      %p185 = por %p183, %p184
      %s186 = ssub.s32 %s23, %s30
      %s187 = ssub.s32 %s22, %s34
      %s188 = sor.u32 %s186, %s187
      %p189 = scmp.eq.s32.totalorder %s188, 0
      %s191 = sadd.s32 %s190, 1
      %s192 = scalar_select %p189, %s190, %s191
      %p195 = pneg %p189
      %p196 = scmp.eq.s32.totalorder %s15, 1
      %p197 = por %p195, %p196
      %p198 = scmp.ne.s32.totalorder %s190, %s193
      %p199 = scmp.eq.s32.totalorder %s15, 0
      %p200 = por %p198, %p199
      %p201 = scmp.ne.s32.totalorder %s190, %s193
      %p202 = scmp.eq.s32.totalorder %s20, 1
      %p203 = por %p201, %p202
      %p204 = scmp.ne.s32.totalorder %s193, %s194
      %p205 = scmp.eq.s32.totalorder %s20, 0
      %p206 = por %p204, %p205
      %p207 = scmp.ne.s32.totalorder %s193, %s194
      %p208 = scmp.eq.s32.totalorder %s21, 1
      %p209 = por %p207, %p208
      %p211 = scmp.ne.s32.totalorder %s194, %s210
      %p212 = scmp.eq.s32.totalorder %s21, 0
      %p213 = por %p211, %p212
      %p214 = scmp.le.s32.totalorder 1, %s15
      %p215 = scmp.lt.s32.totalorder %s15, 3
      %p216 = pnand %p214, %p215
      %p217 = pneg %p216
      // Predicated region
      $region9: #{tpu_custom_call.1} parent=5 // pred_check
        _
      $region10: #{tpu_custom_call.1} parent=5 // pred_check_branch
        %219 = sbr.rel (%p216) target = $region12
      $region11: #{tpu_custom_call.1} parent=5 // pred_region
        %s220 = ssub.s32 %s15, 1
        // Predicated region
        $region13: #{tpu_custom_call.1} parent=11 // pred_check
          %p221 = pneg %p100
        $region14: #{tpu_custom_call.1} parent=11 // pred_check_branch
          %223 = sbr.rel (%p221) target = $region16
        $region15: #{tpu_custom_call.1} parent=11 // pred_region
          _
        $region16: #{tpu_custom_call.1} parent=11 // pred_fallthru
          _
        // Predicated region
        $region17: #{tpu_custom_call.1} parent=11 // pred_check
          %p224 = pneg %p126
        $region18: #{tpu_custom_call.1} parent=11 // pred_check_branch
          %226 = sbr.rel (%p224) target = $region20
        $region19: #{tpu_custom_call.1} parent=11 // pred_region
          %p227 = scmp.lt.s32.totalorder %s24, 0
          %s228 = scalar_select %p227, %s24, 0
          %s229 = smul.addr %s228, 9
          %s230 = smul.addr %s229, 4
          %s231 = scalar_lea.vmem %s3, %s230
        $region20: #{tpu_custom_call.1} parent=11 // pred_fallthru
          _
        // Predicated region
        $region21: #{tpu_custom_call.1} parent=11 // pred_check
          %p232 = pneg %p152
        $region22: #{tpu_custom_call.1} parent=11 // pred_check_branch
          %234 = sbr.rel (%p232) target = $region24
        $region23: #{tpu_custom_call.1} parent=11 // pred_region
          %p235 = scmp.lt.s32.totalorder %s24, 0
          %s236 = scalar_select %p235, %s24, 0
          %s237 = smul.addr %s236, 9
          %s238 = smul.addr %s237, 4
          %s239 = scalar_lea.vmem %s4, %s238
        $region24: #{tpu_custom_call.1} parent=11 // pred_fallthru
          _
        // Predicated region
        $region25: #{tpu_custom_call.1} parent=11 // pred_check
          %p240 = pneg %p178
        $region26: #{tpu_custom_call.1} parent=11 // pred_check_branch
          %242 = sbr.rel (%p240) target = $region28
        $region27: #{tpu_custom_call.1} parent=11 // pred_region
          %p243 = scmp.lt.s32.totalorder %s24, 0
          %s244 = scalar_select %p243, %s24, 0
          %s245 = smul.addr %s244, 8
          %s246 = scalar_lea.vmem %s5, %s245
        $region28: #{tpu_custom_call.1} parent=11 // pred_fallthru
          _
      $region12: #{tpu_custom_call.1} parent=5 // pred_fallthru
        _
      %p247 = scmp.lt.s32.totalorder %s15, 2
      // Predicated region
      $region29: #{tpu_custom_call.1} parent=5 // pred_check
        %p248 = pneg %p247
      $region30: #{tpu_custom_call.1} parent=5 // pred_check_branch
        %250 = sbr.rel (%p248) target = $region32
      $region31: #{tpu_custom_call.1} parent=5 // pred_region
        // Predicated region
        $region33: #{tpu_custom_call.1} parent=31 // pred_check
          %p251 = pneg %p47
        $region34: #{tpu_custom_call.1} parent=31 // pred_check_branch
          %253 = sbr.rel (%p251) target = $region36
        $region35: #{tpu_custom_call.1} parent=31 // pred_region
          %p254 = scmp.lt.s32.totalorder %s23, 1
          %s255 = scalar_select %p254, %s23, 1
          %s256 = smul.addr %s255, 2
          %s257 = smul.addr %s256, 4
          %s258 = scalar_lea.vmem %s0, %s257
        $region36: #{tpu_custom_call.1} parent=31 // pred_fallthru
          _
        // Predicated region
        $region37: #{tpu_custom_call.1} parent=31 // pred_check
          %p259 = pneg %p73
        $region38: #{tpu_custom_call.1} parent=31 // pred_check_branch
          %261 = sbr.rel (%p259) target = $region40
        $region39: #{tpu_custom_call.1} parent=31 // pred_region
          %p262 = scmp.lt.s32.totalorder %s23, 1
          %s263 = scalar_select %p262, %s23, 1
          %s264 = smul.addr %s263, 2
          %s265 = smul.addr %s264, 4
          %s266 = scalar_lea.vmem %s1, %s265
        $region40: #{tpu_custom_call.1} parent=31 // pred_fallthru
          _
      $region32: #{tpu_custom_call.1} parent=5 // pred_fallthru
        _
      %p267 = scmp.le.s32.totalorder 1, %s15
      %p268 = scmp.lt.s32.totalorder %s15, 3
      %p269 = pnand %p267, %p268
      %p270 = pneg %p269
      // Predicated region
      $region41: #{tpu_custom_call.1} parent=5 // pred_check
        _
      $region42: #{tpu_custom_call.1} parent=5 // pred_check_branch
        %272 = sbr.rel (%p269) target = $region44
      $region43: #{tpu_custom_call.1} parent=5 // pred_region
        %s273 = ssub.s32 %s15, 1
        %p274 = scmp.lt.s32.totalorder %s25, 1
        %s275 = scalar_select %p274, %s25, 1
        %s276 = smul.addr %s275, 2
        %s277 = smul.addr %s276, 4
        %s278 = scalar_lea.vmem %s0, %s277
        %p279 = pneg %p53
        %p280 = pneg %p50
        %p281 = scmp.lt.s32.totalorder %s25, 1
        %s282 = scalar_select %p281, %s25, 1
        %s283 = smul.addr %s282, 2
        %s284 = smul.addr %s283, 4
        %s285 = scalar_lea.vmem %s1, %s284
        %p286 = pneg %p79
        %p287 = pneg %p76
        %p288 = pneg %p100
        %p289 = pneg %p97
        %p290 = scmp.lt.s32.totalorder %s24, 0
        %s291 = scalar_select %p290, %s24, 0
        %s292 = smul.addr %s291, 9
        %s293 = smul.addr %s292, 4
        %s294 = scalar_lea.vmem %s3, %s293
        %p295 = pneg %p126
        %p296 = pneg %p123
        %p297 = scmp.lt.s32.totalorder %s24, 0
        %s298 = scalar_select %p297, %s24, 0
        %s299 = smul.addr %s298, 9
        %s300 = smul.addr %s299, 4
        %s301 = scalar_lea.vmem %s4, %s300
        %p302 = pneg %p152
        %p303 = pneg %p149
        %p304 = scmp.lt.s32.totalorder %s24, 0
        %s305 = scalar_select %p304, %s24, 0
        %s306 = smul.addr %s305, 8
        %s307 = scalar_lea.vmem %s5, %s306
        %p308 = pneg %p178
        %p309 = pneg %p175
        %p310 = pneg %p206
        %p311 = pneg %p203
        %s312 = sand.u32 %s193, 1
        %s313 = scalar_lea.sflag [#allocation3], %s312
        %s314 = sand.u32 %s193, 1
        %s315 = smul.addr %s314, 16
        %s316 = scalar_lea.vmem [#allocation2], %s315
        %p317 = scmp.lt.s32.totalorder %s25, 1
        %s318 = scalar_select %p317, %s25, 1
        %s319 = smul.addr %s318, 2
        %s320 = smul.addr %s319, 4
        %s321 = scalar_lea.vmem %s0, %s320
        %p322 = scmp.lt.s32.totalorder %s25, 1
        %s323 = scalar_select %p322, %s25, 1
        %s324 = smul.addr %s323, 2
        %s325 = smul.addr %s324, 4
        %s326 = scalar_lea.vmem %s1, %s325
        %p327 = scmp.lt.s32.totalorder %s24, 0
        %s328 = scalar_select %p327, %s24, 0
        %s329 = smul.addr %s328, 9
        %s330 = smul.addr %s329, 4
        %s331 = scalar_lea.vmem %s3, %s330
        %p332 = scmp.lt.s32.totalorder %s24, 0
        %s333 = scalar_select %p332, %s24, 0
        %s334 = smul.addr %s333, 9
        %s335 = smul.addr %s334, 4
        %s336 = scalar_lea.vmem %s4, %s335
        %p337 = scmp.lt.s32.totalorder %s24, 0
        %s338 = scalar_select %p337, %s24, 0
        %s339 = smul.addr %s338, 8
        %s340 = scalar_lea.vmem %s5, %s339
        %v342 = vld [vmem:[%s321] sm:$0xff]
        %v344 = vcombine.high %v342, %v342
        %v346 = vpack.c.bf16 %v342, %v342
        %v347 = vpack.c.bf16 %v344, %v344
        %v348 = vld [vmem:[%s326] sm:$0xff]
        %v350 = vcombine.high %v348, %v348
        %v352 = vpack.c.bf16 %v348, %v348
        %v353 = vpack.c.bf16 %v350, %v350
        %v354 = vld [vmem:[%s331] sm:$0xf]
        %v355 = vld [vmem:[%s331 + $0x4] sm:$0xf]
        %v356 = vld [vmem:[%s331 + $0x8] sm:$0xf]
        %v357 = vld [vmem:[%s331 + $0xc] sm:$0xf]
        %v358 = vld [vmem:[%s331 + $0x10] sm:$0xf]
        %v359 = vld [vmem:[%s331 + $0x14] sm:$0xf]
        %v360 = vld [vmem:[%s331 + $0x18] sm:$0xf]
        %v361 = vld [vmem:[%s331 + $0x1c] sm:$0xf]
        %v362 = vld [vmem:[%s331 + $0x20] sm:$0xf]
        %v363 = vld [vmem:[%s336] sm:$0xf]
        %v364 = vld [vmem:[%s336 + $0x4] sm:$0xf]
        %v365 = vld [vmem:[%s336 + $0x8] sm:$0xf]
        %v366 = vld [vmem:[%s336 + $0xc] sm:$0xf]
        %v367 = vld [vmem:[%s336 + $0x10] sm:$0xf]
        %v368 = vld [vmem:[%s336 + $0x14] sm:$0xf]
        %v369 = vld [vmem:[%s336 + $0x18] sm:$0xf]
        %v370 = vld [vmem:[%s336 + $0x1c] sm:$0xf]
        %v371 = vld [vmem:[%s336 + $0x20] sm:$0xf]
        %v381 = vunpack.c.l.b16 %v363
        %v382 = vunpack.c.l.b16 %v364
        %v383 = vunpack.c.l.b16 %v365
        %v384 = vunpack.c.l.b16 %v366
        %v385 = vunpack.c.l.b16 %v367
        %v386 = vunpack.c.l.b16 %v368
        %v387 = vunpack.c.l.b16 %v369
        %v388 = vunpack.c.l.b16 %v370
        %v389 = vunpack.c.l.b16 %v371
        %v390 = vpack.c.b16 %v382, %v381
        %v391 = vpack.c.b16 %v384, %v383
        %v392 = vpack.c.b16 %v386, %v385
        %v393 = vpack.c.b16 %v388, %v387
        %v394 = vpack.c.b16 %v389, %v389
        %vm395 = vcmask 31744
        %v397 = vsel %vm395, %v390, 0
        %v400 = vsel %vm395, %v391, 0
        %v403 = vsel %vm395, %v392, 0
        %v406 = vsel %vm395, %v393, 0
        %v409 = vsel %vm395, %v394, 0
        %vm411 = vcmask 1041408
        %v413 = vsel %vm411, %v352, 0
        %v416 = vsel %vm411, %v353, 0
        %418 = vmatprep.subr.bf16.mxu0 %v416
        %419 = vmatpush1.bf16.msra.mxu0 %v413
        %420 = vmatprep.subr.bf16.mxu0 0
        %421 = vmatpush1.bf16.msra.mxu0 0
        %422 = vmatprep.subr.bf16.mxu0 0
        %423 = vmatpush1.bf16.msra.mxu0 0
        %424 = vmatprep.subr.bf16.mxu0 0
        %425 = vmatpush1.bf16.msra.mxu0 0
        %426 = vmatprep.subr.bf16.mxu0 0
        %427 = vmatpush1.bf16.msra.mxu0 0
        %428 = vmatprep.subr.bf16.mxu0 0
        %429 = vmatpush1.bf16.msra.mxu0 0
        %430 = vmatprep.subr.bf16.mxu0 0
        %431 = vmatpush1.bf16.msra.mxu0 0
        %432 = vmatprep.subr.bf16.mxu0 0
        %433 = vmatpush1.bf16.msra.mxu0 0
        %434 = vmatprep.subr.bf16.mxu0 0
        %435 = vmatpush1.bf16.msra.mxu0 0
        %436 = vmatprep.subr.bf16.mxu0 0
        %437 = vmatpush1.bf16.msra.mxu0 0
        %438 = vmatprep.subr.bf16.mxu0 0
        %439 = vmatpush1.bf16.msra.mxu0 0
        %440 = vmatprep.subr.bf16.mxu0 0
        %441 = vmatpush1.bf16.msra.mxu0 0
        %442 = vmatprep.subr.bf16.mxu0 0
        %443 = vmatpush1.bf16.msra.mxu0 0
        %444 = vmatprep.subr.bf16.mxu0 0
        %445 = vmatpush1.bf16.msra.mxu0 0
        %446 = vmatprep.subr.bf16.mxu0 0
        %447 = vmatpush1.bf16.msra.mxu0 0
        %448 = vmatprep.subr.bf16.mxu0 0
        %449 = vmatpush1.bf16.msra.mxu0 0
        %450 = vmatprep.mubr.bf16.mxu0 0
        %451 = vmatmul.mubr.bf16.gmra.mrb[0].mxu0 %v397
        %v452 = vpop.f32.mrb[0].mxu0
        %v453 = vadd.f32 0.0, %v452
        %v454 = vpop.f32.mrb[0].mxu0
        %v455 = vadd.f32 0.0, %v454
        %v456 = vpop.f32.mrb[0].mxu0
        %v457 = vadd.f32 0.0, %v456
        %v458 = vpop.f32.mrb[0].mxu0
        %v459 = vadd.f32 0.0, %v458
        %460 = vmatprep.mubr.bf16.mxu0 0
        %461 = vmatmul.mubr.bf16.gmra.mrb[0].mxu0 %v400
        %v462 = vpop.f32.mrb[0].mxu0
        %v463 = vadd.f32 0.0, %v462
        %v464 = vpop.f32.mrb[0].mxu0
        %v465 = vadd.f32 0.0, %v464
        %v466 = vpop.f32.mrb[0].mxu0
        %v467 = vadd.f32 0.0, %v466
        %v468 = vpop.f32.mrb[0].mxu0
        %v469 = vadd.f32 0.0, %v468
        %470 = vmatprep.mubr.bf16.mxu0 0
        %471 = vmatmul.mubr.bf16.gmra.mrb[0].mxu0 %v403
        %v472 = vpop.f32.mrb[0].mxu0
        %v473 = vadd.f32 0.0, %v472
        %v474 = vpop.f32.mrb[0].mxu0
        %v475 = vadd.f32 0.0, %v474
        %v476 = vpop.f32.mrb[0].mxu0
        %v477 = vadd.f32 0.0, %v476
        %v478 = vpop.f32.mrb[0].mxu0
        %v479 = vadd.f32 0.0, %v478
        %480 = vmatprep.mubr.bf16.mxu0 0
        %481 = vmatmul.mubr.bf16.gmra.mrb[0].mxu0 %v406
        %v482 = vpop.f32.mrb[0].mxu0
        %v483 = vadd.f32 0.0, %v482
        %v484 = vpop.f32.mrb[0].mxu0
        %v485 = vadd.f32 0.0, %v484
        %v486 = vpop.f32.mrb[0].mxu0
        %v487 = vadd.f32 0.0, %v486
        %v488 = vpop.f32.mrb[0].mxu0
        %v489 = vadd.f32 0.0, %v488
        %490 = vmatprep.mubr.bf16.mxu0 0
        %491 = vmatmul.mubr.bf16.gmra.mrb[0].mxu0 %v409
        %v492 = vpop.f32.mrb[0].mxu0
        %v493 = vadd.f32 0.0, %v492
        %v494 = vpop.f32.mrb[0].mxu0
        %v495 = vadd.f32 0.0, %v494
        %v496 = vpop.f32.mrb[0].mxu0
        %v497 = vpop.f32.mrb[0].mxu0
        %498 = vdwg.mxu0
        %v508 = vunpack.c.l.b16 %v354
        %v509 = vunpack.c.l.b16 %v355
        %v510 = vunpack.c.l.b16 %v356
        %v511 = vunpack.c.l.b16 %v357
        %v512 = vunpack.c.l.b16 %v358
        %v513 = vunpack.c.l.b16 %v359
        %v514 = vunpack.c.l.b16 %v360
        %v515 = vunpack.c.l.b16 %v361
        %v516 = vunpack.c.l.b16 %v362
        %v517 = vpack.c.b16 %v509, %v508
        %v518 = vpack.c.b16 %v511, %v510
        %v519 = vpack.c.b16 %v513, %v512
        %v520 = vpack.c.b16 %v515, %v514
        %v521 = vpack.c.b16 %v516, %v516
        %v523 = vsel %vm395, %v517, 0
        %v526 = vsel %vm395, %v518, 0
        %v529 = vsel %vm395, %v519, 0
        %v532 = vsel %vm395, %v520, 0
        %v535 = vsel %vm395, %v521, 0
        %v538 = vsel %vm411, %v346, 0
        %v541 = vsel %vm411, %v347, 0
        %543 = vmatprep.subr.bf16.mxu0 %v541
        %544 = vmatpush1.bf16.msra.mxu0 %v538
        %545 = vmatprep.subr.bf16.mxu0 0
        %546 = vmatpush1.bf16.msra.mxu0 0
        %547 = vmatprep.subr.bf16.mxu0 0
        %548 = vmatpush1.bf16.msra.mxu0 0
        %549 = vmatprep.subr.bf16.mxu0 0
        %550 = vmatpush1.bf16.msra.mxu0 0
        %551 = vmatprep.subr.bf16.mxu0 0
        %552 = vmatpush1.bf16.msra.mxu0 0
        %553 = vmatprep.subr.bf16.mxu0 0
        %554 = vmatpush1.bf16.msra.mxu0 0
        %555 = vmatprep.subr.bf16.mxu0 0
        %556 = vmatpush1.bf16.msra.mxu0 0
        %557 = vmatprep.subr.bf16.mxu0 0
        %558 = vmatpush1.bf16.msra.mxu0 0
        %559 = vmatprep.subr.bf16.mxu0 0
        %560 = vmatpush1.bf16.msra.mxu0 0
        %561 = vmatprep.subr.bf16.mxu0 0
        %562 = vmatpush1.bf16.msra.mxu0 0
        %563 = vmatprep.subr.bf16.mxu0 0
        %564 = vmatpush1.bf16.msra.mxu0 0
        %565 = vmatprep.subr.bf16.mxu0 0
        %566 = vmatpush1.bf16.msra.mxu0 0
        %567 = vmatprep.subr.bf16.mxu0 0
        %568 = vmatpush1.bf16.msra.mxu0 0
        %569 = vmatprep.subr.bf16.mxu0 0
        %570 = vmatpush1.bf16.msra.mxu0 0
        %571 = vmatprep.subr.bf16.mxu0 0
        %572 = vmatpush1.bf16.msra.mxu0 0
        %573 = vmatprep.subr.bf16.mxu0 0
        %574 = vmatpush1.bf16.msra.mxu0 0
        %575 = vmatprep.mubr.bf16.mxu0 0
        %576 = vmatmul.mubr.bf16.gmra.mrb[0].mxu0 %v523
        %v577 = vpop.f32.mrb[0].mxu0
        %v578 = vadd.f32 %v453, %v577
        %v579 = vpop.f32.mrb[0].mxu0
        %v580 = vadd.f32 %v455, %v579
        %v581 = vpop.f32.mrb[0].mxu0
        %v582 = vadd.f32 %v457, %v581
        %v583 = vpop.f32.mrb[0].mxu0
        %v584 = vadd.f32 %v459, %v583
        %585 = vmatprep.mubr.bf16.mxu0 0
        %586 = vmatmul.mubr.bf16.gmra.mrb[0].mxu0 %v526
        %v587 = vpop.f32.mrb[0].mxu0
        %v588 = vadd.f32 %v463, %v587
        %v589 = vpop.f32.mrb[0].mxu0
        %v590 = vadd.f32 %v465, %v589
        %v591 = vpop.f32.mrb[0].mxu0
        %v592 = vadd.f32 %v467, %v591
        %v593 = vpop.f32.mrb[0].mxu0
        %v594 = vadd.f32 %v469, %v593
        %595 = vmatprep.mubr.bf16.mxu0 0
        %596 = vmatmul.mubr.bf16.gmra.mrb[0].mxu0 %v529
        %v597 = vpop.f32.mrb[0].mxu0
        %v598 = vadd.f32 %v473, %v597
        %v599 = vpop.f32.mrb[0].mxu0
        %v600 = vadd.f32 %v475, %v599
        %v601 = vpop.f32.mrb[0].mxu0
        %v602 = vadd.f32 %v477, %v601
        %v603 = vpop.f32.mrb[0].mxu0
        %v604 = vadd.f32 %v479, %v603
        %605 = vmatprep.mubr.bf16.mxu0 0
        %606 = vmatmul.mubr.bf16.gmra.mrb[0].mxu0 %v532
        %v607 = vpop.f32.mrb[0].mxu0
        %v608 = vadd.f32 %v483, %v607
        %v609 = vpop.f32.mrb[0].mxu0
        %v610 = vadd.f32 %v485, %v609
        %v611 = vpop.f32.mrb[0].mxu0
        %v612 = vadd.f32 %v487, %v611
        %v613 = vpop.f32.mrb[0].mxu0
        %v614 = vadd.f32 %v489, %v613
        %615 = vmatprep.mubr.bf16.mxu0 0
        %616 = vmatmul.mubr.bf16.gmra.mrb[0].mxu0 %v535
        %v617 = vpop.f32.mrb[0].mxu0
        %v618 = vadd.f32 %v493, %v617
        %v619 = vpop.f32.mrb[0].mxu0
        %v620 = vadd.f32 %v495, %v619
        %v621 = vpop.f32.mrb[0].mxu0
        %v622 = vpop.f32.mrb[0].mxu0
        %623 = vdwg.mxu0
        %v624 = vld [vmem:[%s340] sm:$0xff]
        %625 = vrot.lane.b32.xlu0 %v578, 17
        %v626 = vpop.permute.xlu0 %625
        %627 = vrot.lane.b32.xlu0 %v580, 17
        %v628 = vpop.permute.xlu0 %627
        %v629 = vlaneseq
        %v630 = vand.u32 %v629, 127
        %vm631 = vcmp.lt.s32.totalorder %v630, 17
        %v632 = vsel %vm631, %v626, %v628
        %v633 = vsel %vm631, %v628, %v626
        %v634 = vld [vmem:[%s2] sm:$0x3]
        %v636 = vlaneseq
        %v637 = vshrl.u32 %v636, 7
        %v638 = vsub.s32 0, %v637
        %v639 = vrot.slane %v634, %v638
        %v640 = vlaneseq
        %v641 = vshrl.u32 %v640, 7
        %v642 = vsub.s32 1, %v641
        %v643 = vrot.slane %v634, %v642
        %v646 = vmul.f32 %v639, %v633
        %v647 = vmul.f32 %v643, %v632
        %649 = vset.pattern.permute.xlu0 0
        %650 = vperm.xlu0 %649, %v624
        %v651 = vpop.permute.xlu0 %650
        %v653 = vadd.f32 %v651, %v646
        %v654 = vadd.f32 %v651, %v647
        %655 = vrot.lane.b32.xlu0 %v582, 16
        %v656 = vpop.permute.xlu0 %655
        %657 = vrot.lane.b32.xlu0 %v584, 16
        %v658 = vpop.permute.xlu0 %657
        %vm659 = vcmp.lt.s32.totalorder %v630, 16
        %v660 = vsel %vm659, %v656, %v658
        %v661 = vsel %vm659, %v658, %v656
        %s662 = scalar_lea.vmem %s2, 2
        %v663 = vld [vmem:[%s662] sm:$0x3]
        %v665 = vlaneseq
        %v666 = vshrl.u32 %v665, 7
        %v667 = vsub.s32 0, %v666
        %v668 = vrot.slane %v663, %v667
        %v669 = vlaneseq
        %v670 = vshrl.u32 %v669, 7
        %v671 = vsub.s32 1, %v670
        %v672 = vrot.slane %v663, %v671
        %v675 = vmul.f32 %v668, %v661
        %v676 = vmul.f32 %v672, %v660
        %v677 = vadd.f32 %v653, %v675
        %v678 = vadd.f32 %v654, %v676
        %679 = vrot.lane.b32.xlu0 %v588, 15
        %v680 = vpop.permute.xlu0 %679
        %681 = vrot.lane.b32.xlu0 %v590, 15
        %v682 = vpop.permute.xlu0 %681
        %vm683 = vcmp.lt.s32.totalorder %v630, 15
        %v684 = vsel %vm683, %v680, %v682
        %v685 = vsel %vm683, %v682, %v680
        %s686 = scalar_lea.vmem %s2, 4
        %v687 = vld [vmem:[%s686] sm:$0x3]
        %v689 = vlaneseq
        %v690 = vshrl.u32 %v689, 7
        %v691 = vsub.s32 0, %v690
        %v692 = vrot.slane %v687, %v691
        %v693 = vlaneseq
        %v694 = vshrl.u32 %v693, 7
        %v695 = vsub.s32 1, %v694
        %v696 = vrot.slane %v687, %v695
        %v699 = vmul.f32 %v692, %v685
        %v700 = vmul.f32 %v696, %v684
        %v701 = vadd.f32 %v677, %v699
        %v702 = vadd.f32 %v678, %v700
        %703 = vrot.lane.b32.xlu0 %v592, 1
        %v704 = vpop.permute.xlu0 %703
        %705 = vrot.lane.b32.xlu0 %v594, 1
        %v706 = vpop.permute.xlu0 %705
        %vm707 = vcmp.lt.s32.totalorder %v630, 1
        %v708 = vsel %vm707, %v704, %v706
        %v709 = vsel %vm707, %v706, %v704
        %s710 = scalar_lea.vmem %s2, 6
        %v711 = vld [vmem:[%s710] sm:$0x3]
        %v713 = vlaneseq
        %v714 = vshrl.u32 %v713, 7
        %v715 = vsub.s32 0, %v714
        %v716 = vrot.slane %v711, %v715
        %v717 = vlaneseq
        %v718 = vshrl.u32 %v717, 7
        %v719 = vsub.s32 1, %v718
        %v720 = vrot.slane %v711, %v719
        %v723 = vmul.f32 %v716, %v709
        %v724 = vmul.f32 %v720, %v708
        %v725 = vadd.f32 %v701, %v723
        %v726 = vadd.f32 %v702, %v724
        %s727 = scalar_lea.vmem %s2, 8
        %v728 = vld [vmem:[%s727] sm:$0x3]
        %v730 = vlaneseq
        %v731 = vshrl.u32 %v730, 7
        %v732 = vsub.s32 0, %v731
        %v733 = vrot.slane %v728, %v732
        %v734 = vlaneseq
        %v735 = vshrl.u32 %v734, 7
        %v736 = vsub.s32 1, %v735
        %v737 = vrot.slane %v728, %v736
        %v740 = vmul.f32 %v733, %v598
        %v741 = vmul.f32 %v737, %v600
        %v742 = vadd.f32 %v725, %v740
        %v743 = vadd.f32 %v726, %v741
        %744 = vrot.lane.b32.xlu0 %v602, 127
        %v745 = vpop.permute.xlu0 %744
        %746 = vrot.lane.b32.xlu0 %v604, 127
        %v747 = vpop.permute.xlu0 %746
        %vm748 = vcmp.lt.s32.totalorder %v630, 127
        %v749 = vsel %vm748, %v745, %v747
        %v750 = vsel %vm748, %v747, %v745
        %s751 = scalar_lea.vmem %s2, 10
        %v752 = vld [vmem:[%s751] sm:$0x3]
        %v754 = vlaneseq
        %v755 = vshrl.u32 %v754, 7
        %v756 = vsub.s32 0, %v755
        %v757 = vrot.slane %v752, %v756
        %v758 = vlaneseq
        %v759 = vshrl.u32 %v758, 7
        %v760 = vsub.s32 1, %v759
        %v761 = vrot.slane %v752, %v760
        %v764 = vmul.f32 %v757, %v749
        %v765 = vmul.f32 %v761, %v750
        %v766 = vadd.f32 %v742, %v764
        %v767 = vadd.f32 %v743, %v765
        %768 = vrot.lane.b32.xlu0 %v608, 113
        %v769 = vpop.permute.xlu0 %768
        %770 = vrot.lane.b32.xlu0 %v610, 113
        %v771 = vpop.permute.xlu0 %770
        %vm772 = vcmp.lt.s32.totalorder %v630, 113
        %v773 = vsel %vm772, %v769, %v771
        %v774 = vsel %vm772, %v771, %v769
        %s775 = scalar_lea.vmem %s2, 12
        %v776 = vld [vmem:[%s775] sm:$0x3]
        %v778 = vlaneseq
        %v779 = vshrl.u32 %v778, 7
        %v780 = vsub.s32 0, %v779
        %v781 = vrot.slane %v776, %v780
        %v782 = vlaneseq
        %v783 = vshrl.u32 %v782, 7
        %v784 = vsub.s32 1, %v783
        %v785 = vrot.slane %v776, %v784
        %v788 = vmul.f32 %v781, %v773
        %v789 = vmul.f32 %v785, %v774
        %v790 = vadd.f32 %v766, %v788
        %v791 = vadd.f32 %v767, %v789
        %792 = vrot.lane.b32.xlu0 %v612, 112
        %v793 = vpop.permute.xlu0 %792
        %794 = vrot.lane.b32.xlu0 %v614, 112
        %v795 = vpop.permute.xlu0 %794
        %vm796 = vcmp.lt.s32.totalorder %v630, 112
        %v797 = vsel %vm796, %v793, %v795
        %v798 = vsel %vm796, %v795, %v793
        %s799 = scalar_lea.vmem %s2, 14
        %v800 = vld [vmem:[%s799] sm:$0x3]
        %v802 = vlaneseq
        %v803 = vshrl.u32 %v802, 7
        %v804 = vsub.s32 0, %v803
        %v805 = vrot.slane %v800, %v804
        %v806 = vlaneseq
        %v807 = vshrl.u32 %v806, 7
        %v808 = vsub.s32 1, %v807
        %v809 = vrot.slane %v800, %v808
        %v812 = vmul.f32 %v805, %v797
        %v813 = vmul.f32 %v809, %v798
        %v814 = vadd.f32 %v790, %v812
        %v815 = vadd.f32 %v791, %v813
        %816 = vrot.lane.b32.xlu0 %v618, 111
        %v817 = vpop.permute.xlu0 %816
        %818 = vrot.lane.b32.xlu0 %v620, 111
        %v819 = vpop.permute.xlu0 %818
        %vm820 = vcmp.lt.s32.totalorder %v630, 111
        %v821 = vsel %vm820, %v817, %v819
        %v822 = vsel %vm820, %v819, %v817
        %s823 = scalar_lea.vmem %s2, 16
        %v824 = vld [vmem:[%s823] sm:$0x3]
        %v826 = vlaneseq
        %v827 = vshrl.u32 %v826, 7
        %v828 = vsub.s32 0, %v827
        %v829 = vrot.slane %v824, %v828
        %v830 = vlaneseq
        %v831 = vshrl.u32 %v830, 7
        %v832 = vsub.s32 1, %v831
        %v833 = vrot.slane %v824, %v832
        %v836 = vmul.f32 %v829, %v821
        %v837 = vmul.f32 %v833, %v822
        %v838 = vadd.f32 %v814, %v836
        %v839 = vadd.f32 %v815, %v837
        %v840 = vmax.f32 %v838, 0.0
        %v841 = vmax.f32 %v839, 0.0
        %842 = vst [vmem:[%s316] sm:$0xff] %v840
        %843 = vst [vmem:[%s316 + $0x8] sm:$0xff] %v841
        %s844 = sand.u32 %s193, 1
        %s845 = scalar_lea.sflag [#allocation3], %s844
        %s846 = sand.u32 %s193, 1
        %s847 = smul.addr %s846, 16
        %s848 = scalar_lea.vmem [#allocation2], %s847
        // Predicated region
        $region45: #{tpu_custom_call.1} parent=43 // pred_check
          %p849 = pneg %p203
        $region46: #{tpu_custom_call.1} parent=43 // pred_check_branch
          %851 = sbr.rel (%p849) target = $region48
        $region47: #{tpu_custom_call.1} parent=43 // pred_region
          %s853 = ssub.s32 256, 256
          %854 = vsyncadd %s845, %s853
          %s855 = smul.addr %s24, 2
          %s856 = smul.addr %s25, 2
          %s857 = sadd.s32 %s855, %s856
          %s858 = smul.addr %s857, 128
          %s859 = scalar_lea.hbm %s6, %s858
          %s861 = sshll.u32 %s848, 4
          %s862 = int_to_ptr.vmem [resolvable:$true] %s861
          %864 = dma.vmem_to_hbm [thread:$0]  %s862, 256, %s859, %s845
        $region48: #{tpu_custom_call.1} parent=43 // pred_fallthru
          _
      $region44: #{tpu_custom_call.1} parent=5 // pred_fallthru
        _
      %p865 = scmp.le.s32.totalorder 2, %s15
      // Predicated region
      $region49: #{tpu_custom_call.1} parent=5 // pred_check
        %p866 = pneg %p865
      $region50: #{tpu_custom_call.1} parent=5 // pred_check_branch
        %868 = sbr.rel (%p866) target = $region52
      $region51: #{tpu_custom_call.1} parent=5 // pred_region
        %s869 = ssub.s32 %s15, 2
        // Predicated region
        $region53: #{tpu_custom_call.1} parent=51 // pred_check
          %p870 = pneg %p209
        $region54: #{tpu_custom_call.1} parent=51 // pred_check_branch
          %872 = sbr.rel (%p870) target = $region56
        $region55: #{tpu_custom_call.1} parent=51 // pred_region
          %s873 = sand.u32 %s194, 1
          %s874 = scalar_lea.sflag [#allocation3], %s873
          %s875 = sand.u32 %s194, 1
          %s876 = smul.addr %s875, 16
          %s877 = scalar_lea.vmem [#allocation2], %s876
          %878 = dma.done %s874, 256
        $region56: #{tpu_custom_call.1} parent=51 // pred_fallthru
          _
      $region52: #{tpu_custom_call.1} parent=5 // pred_fallthru
        _
    $region6: #{tpu_custom_call.1} parent=1 // loop_footer
      %s19 = sadd.s32 1, %s15
    $region7: #{tpu_custom_call.1} parent=1 // loop_footer_branch
      %14 = sbr.rel target = $region3
    $region8: #{tpu_custom_call.1} parent=1 // loop_exit
      _
    %879 = vsyncpa [#allocation3], 1
    %s880 = scalar_lea.sflag [#allocation3], 1
    %881 = vsyncpa %s880, 1

</llo_original>
